<compile_context>
chip_gen: v6e
topology: v6e:2x2x1
jax: 0.10.0
libtpu: 0.0.40
codegen_flags: <defaults>
</compile_context>

<pallas_src>
import math

import jax
import jax.numpy as jnp
from jax.experimental import pallas as pl
from jax.experimental.pallas import tpu as pltpu

_LANE_COLS = 1024                 # lane-dense last dim (multiple of 128)
_TARGET_TILE_BYTES = 2 * 1024 * 1024


def _make_kernel(k1, k2):
    """Build the elementwise kernel with k1/k2 baked in as Python floats."""
    k1 = float(k1)
    k2 = float(k2)

    def kernel(l_deg_ref, l_adj_ref, l_deg_dist_ref, out_ref):
        # Upcast to f32 for the weighted sum; cast only at the store.
        adj = l_adj_ref[...].astype(jnp.float32)
        dist = l_deg_dist_ref[...].astype(jnp.float32)
        deg = l_deg_ref[...].astype(jnp.float32)
        # Static fast path: skip the multiplies when the weights are 1.0.
        dist_term = dist if k1 == 1.0 else k1 * dist
        deg_term = deg if k2 == 1.0 else k2 * deg
        out_ref[...] = (adj + dist_term + deg_term).astype(out_ref.dtype)

    return kernel


def position_encode_loss(l_deg, l_adj, l_deg_dist, *, k1=1.0, k2=1.0):
    """Pallas TPU equivalent of Position_encode_loss.forward.

    Works for any (broadcast-identical) input shape: inputs are flattened,
    zero-padded to a lane-dense 2-D slab, streamed through a single VPU
    elementwise kernel, and the result is reshaped back.
    """
    assert l_deg.shape == l_adj.shape == l_deg_dist.shape
    assert l_deg.dtype == l_adj.dtype == l_deg_dist.dtype

    orig_shape = l_deg.shape
    dtype = l_deg.dtype
    itemsize = jnp.dtype(dtype).itemsize
    n = math.prod(orig_shape)

    # Sublane multiple per dtype width (packed sub-32-bit dtypes).
    sub = {4: 8, 2: 16, 1: 32}.get(itemsize, 8)

    # Pad flattened length to a whole number of (sub, _LANE_COLS) tiles.
    chunk = _LANE_COLS * sub
    padded_n = ((n + chunk - 1) // chunk) * chunk
    total_rows = padded_n // _LANE_COLS          # multiple of `sub`

    # Rows per grid step: target ~2 MiB per input tile.
    target_rows = max(sub, (_TARGET_TILE_BYTES // (_LANE_COLS * itemsize)) // sub * sub)
    block_rows = min(target_rows, total_rows)

    # Prefer >=2 grid steps (megacore sharding on v7x) when data allows it.
    if total_rows <= block_rows and total_rows >= 2 * sub:
        block_rows = ((total_rows // 2 + sub - 1) // sub) * sub

    grid_rows = pl.cdiv(total_rows, block_rows)
    padded_rows = grid_rows * block_rows
    padded_n = padded_rows * _LANE_COLS

    def prep(x):
        flat = jnp.reshape(x, (-1,))
        pad = padded_n - n
        if pad:
            flat = jnp.pad(flat, (0, pad))
        return flat.reshape(padded_rows, _LANE_COLS)

    deg2d = prep(l_deg)
    adj2d = prep(l_adj)
    dist2d = prep(l_deg_dist)

    spec = pl.BlockSpec((block_rows, _LANE_COLS), lambda i: (i, 0))

    out2d = pl.pallas_call(
        _make_kernel(k1, k2),
        out_shape=jax.ShapeDtypeStruct((padded_rows, _LANE_COLS), dtype),
        grid_spec=pl.GridSpec(
            grid=(grid_rows,),
            in_specs=[spec, spec, spec],
            out_specs=spec,
        ),
        compiler_params=pltpu.CompilerParams(
            dimension_semantics=("parallel",),
            # 3 inputs + 1 output, double-buffered, ~2 MiB tiles -> ~16 MiB.
            vmem_limit_bytes=32 * 1024 * 1024,
        ),
    )(deg2d, adj2d, dist2d)

    return out2d.reshape(-1)[:n].reshape(orig_shape)


if __name__ == "__main__":
    key = jax.random.PRNGKey(0)
    k_deg, k_adj, k_dist = jax.random.split(key, 3)

    # Small synthetic per-element loss maps (arbitrary shape is supported).
    shape = (8, 32, 32)
    L_deg = jax.random.normal(k_deg, shape, dtype=jnp.float32)
    L_adj = jax.random.normal(k_adj, shape, dtype=jnp.float32)
    L_deg_dist = jax.random.normal(k_dist, shape, dtype=jnp.float32)

    k1, k2 = 1.0, 1.0

    out = position_encode_loss(L_deg, L_adj, L_deg_dist, k1=k1, k2=k2)
    out = jax.block_until_ready(out)

    # Reference (plain JAX, mirrors the PyTorch forward exactly).
    ref = L_adj + k1 * L_deg_dist + k2 * L_deg
    assert out.shape == ref.shape
    assert jnp.allclose(out, ref, atol=1e-6, rtol=1e-6), "mismatch vs reference"

    # Also exercise the non-unit-weight path.
    out2 = position_encode_loss(L_deg, L_adj, L_deg_dist, k1=0.5, k2=2.0)
    out2 = jax.block_until_ready(out2)
    ref2 = L_adj + 0.5 * L_deg_dist + 2.0 * L_deg
    assert jnp.allclose(out2, ref2, atol=1e-6, rtol=1e-6), "mismatch vs reference (weighted)"

    print("KERNEL_OK")
</pallas_src>

<mosaic_0001>
module attributes {stable_mosaic.version = 11 : i64} {
  func.func @kernel(%arg0: i32, %arg1: memref<8x1024xf32, #tpu.memory_space<vmem>>, %arg2: memref<8x1024xf32, #tpu.memory_space<vmem>>, %arg3: memref<8x1024xf32, #tpu.memory_space<vmem>>, %arg4: memref<8x1024xf32, #tpu.memory_space<vmem>>) attributes {dimension_semantics = [#tpu.dimension_semantics<parallel>], iteration_bounds = array<i64: 1>, scalar_prefetch = 0 : i64, scratch_operands = 0 : i64, tpu.core_type = #tpu.core_type<tc>, window_params = [{transform_indices = @transform_0, window_bounds = array<i64: 8, 1024>}, {transform_indices = @transform_1, window_bounds = array<i64: 8, 1024>}, {transform_indices = @transform_2, window_bounds = array<i64: 8, 1024>}, {transform_indices = @transform_3, window_bounds = array<i64: 8, 1024>}]} {
    %c0 = arith.constant 0 : index
    %c0_0 = arith.constant 0 : index
    %0 = vector.load %arg2[%c0, %c0_0] : memref<8x1024xf32, #tpu.memory_space<vmem>>, vector<8x1024xf32>
    %c0_1 = arith.constant 0 : index
    %c0_2 = arith.constant 0 : index
    %1 = vector.load %arg3[%c0_1, %c0_2] : memref<8x1024xf32, #tpu.memory_space<vmem>>, vector<8x1024xf32>
    %c0_3 = arith.constant 0 : index
    %c0_4 = arith.constant 0 : index
    %2 = vector.load %arg1[%c0_3, %c0_4] : memref<8x1024xf32, #tpu.memory_space<vmem>>, vector<8x1024xf32>
    %3 = arith.addf %0, %1 : vector<8x1024xf32>
    %4 = arith.addf %3, %2 : vector<8x1024xf32>
    %c0_5 = arith.constant 0 : index
    %c0_6 = arith.constant 0 : index
    %5 = vector.load %arg4[%c0_5, %c0_6] : memref<8x1024xf32, #tpu.memory_space<vmem>>, vector<8x1024xf32>
    tpu.vector_store %arg4[%c0_5, %c0_6], %4 {strides = array<i32>} : memref<8x1024xf32, #tpu.memory_space<vmem>>, vector<8x1024xf32>,
    return
  }
  func.func @transform_0(%arg0: i32) -> (i32, i32) {
    %c0_i32 = arith.constant 0 : i32
    %c0_i32_0 = arith.constant 0 : i32
    return %arg0, %c0_i32 : i32, i32
  }
  func.func @transform_1(%arg0: i32) -> (i32, i32) {
    %c0_i32 = arith.constant 0 : i32
    %c0_i32_0 = arith.constant 0 : i32
    return %arg0, %c0_i32 : i32, i32
  }
  func.func @transform_2(%arg0: i32) -> (i32, i32) {
    %c0_i32 = arith.constant 0 : i32
    %c0_i32_0 = arith.constant 0 : i32
    return %arg0, %c0_i32 : i32, i32
  }
  func.func @transform_3(%arg0: i32) -> (i32, i32) {
    %c0_i32 = arith.constant 0 : i32
    %c0_i32_0 = arith.constant 0 : i32
    return %arg0, %c0_i32 : i32, i32
  }
}

</mosaic_0001>

<llo_original>
// kernel: tpu_custom_call.1
$region0: #{tpu_custom_call.1}
  #allocation0 [shape = 'u32[]', space=smem, size = 0x4, offset = 0x4, fixed_abs, tag = 'smem constant byte address 0x4 - core index']
  #allocation1 [shape = 'u32[144,128]{1,0:T(1,128)}', space=vmem, size = 0x12000, scoped, tag = 'internal scratch']
  %s0 = inlined_call_operand.hbm [shape: f32[8,1024], index: 0, kind: input, shape index: {}]
  %s1 = inlined_call_operand.hbm [shape: f32[8,1024], index: 1, kind: input, shape index: {}]
  %s2 = inlined_call_operand.hbm [shape: f32[8,1024], index: 2, kind: input, shape index: {}]
  %s3 = inlined_call_operand.hbm [shape: f32[8,1024], index: 3, kind: output, shape index: {}]
  %s4 = sld [smem:[#allocation0]]
  $region34: #{tpu_custom_call.1} parent=0
    _
  %s6 = ssub.s32 1, %s4
  %s7 = scalar_select 0, %s6, %s4
  $region1: #{tpu_custom_call.1} parent=0
    #allocation2 [shape = 'u8[32768]{0}', space=vmem, size = 0x8000, scoped, tag = 'input window, operand 0, single buffered']
    #allocation3 [shape = 's32[1]{0}', space=sflag, size = 0x4, scoped, tag = 'scoped memory for tpu_custom_call.1']
    #allocation4 [shape = 's32[1]{0}', space=sflag, size = 0x4, scoped, tag = 'scoped memory for tpu_custom_call.1']
    #allocation5 [shape = 'u8[32768]{0}', space=vmem, size = 0x8000, scoped, tag = 'input window, operand 1, single buffered']
    #allocation6 [shape = 's32[1]{0}', space=sflag, size = 0x4, scoped, tag = 'scoped memory for tpu_custom_call.1']
    #allocation7 [shape = 'u8[32768]{0}', space=vmem, size = 0x8000, scoped, tag = 'input window, operand 2, single buffered']
    #allocation8 [shape = 'u8[32768]{0}', space=vmem, size = 0x8000, scoped, tag = 'output window, operand 0, single buffered']
    %8 = vsyncpa [#allocation3], 0
    %9 = vsyncpa [#allocation6], 0
    %10 = vsyncpa [#allocation4], 0
    // Predicated region
    $region2: #{tpu_custom_call.1} parent=1 // pred_check
      _
    $region3: #{tpu_custom_call.1} parent=1 // pred_check_branch
      %12 = sbr.rel (0) target = $region5
    $region4: #{tpu_custom_call.1} parent=1 // pred_region
      %s14 = ssub.s32 1024, 1024
      %15 = vsyncadd [#allocation3], %s14
      %s17 = sshll.u32 [#allocation2], 4
      %s18 = int_to_ptr.vmem [resolvable:$true] %s17
      %20 = dma.hbm_to_vmem [thread:$0]  %s0, 1024, %s18, [#allocation3]
    $region5: #{tpu_custom_call.1} parent=1 // pred_fallthru
      _
    // Predicated region
    $region6: #{tpu_custom_call.1} parent=1 // pred_check
      _
    $region7: #{tpu_custom_call.1} parent=1 // pred_check_branch
      %22 = sbr.rel (0) target = $region9
    $region8: #{tpu_custom_call.1} parent=1 // pred_region
      %s24 = ssub.s32 1024, 1024
      %25 = vsyncadd [#allocation6], %s24
      %s27 = sshll.u32 [#allocation5], 4
      %s28 = int_to_ptr.vmem [resolvable:$true] %s27
      %30 = dma.hbm_to_vmem [thread:$0]  %s1, 1024, %s28, [#allocation6]
    $region9: #{tpu_custom_call.1} parent=1 // pred_fallthru
      _
    // Predicated region
    $region10: #{tpu_custom_call.1} parent=1 // pred_check
      _
    $region11: #{tpu_custom_call.1} parent=1 // pred_check_branch
      %32 = sbr.rel (0) target = $region13
    $region12: #{tpu_custom_call.1} parent=1 // pred_region
      %s34 = ssub.s32 1024, 1024
      %35 = vsyncadd [#allocation6], %s34
      %s37 = sshll.u32 [#allocation7], 4
      %s38 = int_to_ptr.vmem [resolvable:$true] %s37
      %40 = dma.hbm_to_vmem [thread:$0]  %s2, 1024, %s38, [#allocation6]
    $region13: #{tpu_custom_call.1} parent=1 // pred_fallthru
      _
    // Predicated region
    $region14: #{tpu_custom_call.1} parent=1 // pred_check
      _
    $region15: #{tpu_custom_call.1} parent=1 // pred_check_branch
      %42 = sbr.rel (0) target = $region17
    $region16: #{tpu_custom_call.1} parent=1 // pred_region
      %43 = dma.done [#allocation3], 1024
    $region17: #{tpu_custom_call.1} parent=1 // pred_fallthru
      _
    // Predicated region
    $region18: #{tpu_custom_call.1} parent=1 // pred_check
      _
    $region19: #{tpu_custom_call.1} parent=1 // pred_check_branch
      %45 = sbr.rel (0) target = $region21
    $region20: #{tpu_custom_call.1} parent=1 // pred_region
      %46 = dma.done [#allocation6], 1024
    $region21: #{tpu_custom_call.1} parent=1 // pred_fallthru
      _
    // Predicated region
    $region22: #{tpu_custom_call.1} parent=1 // pred_check
      _
    $region23: #{tpu_custom_call.1} parent=1 // pred_check_branch
      %48 = sbr.rel (0) target = $region25
    $region24: #{tpu_custom_call.1} parent=1 // pred_region
      %49 = dma.done [#allocation6], 1024
    $region25: #{tpu_custom_call.1} parent=1 // pred_fallthru
      _
    %v50 = vld [vmem:[#allocation5] sm:$0xff]
    %v51 = vld [vmem:[#allocation5 + $0x8] sm:$0xff]
    %v52 = vld [vmem:[#allocation5 + $0x10] sm:$0xff]
    %v53 = vld [vmem:[#allocation5 + $0x18] sm:$0xff]
    %v54 = vld [vmem:[#allocation5 + $0x20] sm:$0xff]
    %v55 = vld [vmem:[#allocation5 + $0x28] sm:$0xff]
    %v56 = vld [vmem:[#allocation5 + $0x30] sm:$0xff]
    %v57 = vld [vmem:[#allocation5 + $0x38] sm:$0xff]
    %v58 = vld [vmem:[#allocation7] sm:$0xff]
    %v59 = vld [vmem:[#allocation7 + $0x8] sm:$0xff]
    %v60 = vld [vmem:[#allocation7 + $0x10] sm:$0xff]
    %v61 = vld [vmem:[#allocation7 + $0x18] sm:$0xff]
    %v62 = vld [vmem:[#allocation7 + $0x20] sm:$0xff]
    %v63 = vld [vmem:[#allocation7 + $0x28] sm:$0xff]
    %v64 = vld [vmem:[#allocation7 + $0x30] sm:$0xff]
    %v65 = vld [vmem:[#allocation7 + $0x38] sm:$0xff]
    %v66 = vld [vmem:[#allocation2] sm:$0xff]
    %v67 = vld [vmem:[#allocation2 + $0x8] sm:$0xff]
    %v68 = vld [vmem:[#allocation2 + $0x10] sm:$0xff]
    %v69 = vld [vmem:[#allocation2 + $0x18] sm:$0xff]
    %v70 = vld [vmem:[#allocation2 + $0x20] sm:$0xff]
    %v71 = vld [vmem:[#allocation2 + $0x28] sm:$0xff]
    %v72 = vld [vmem:[#allocation2 + $0x30] sm:$0xff]
    %v73 = vld [vmem:[#allocation2 + $0x38] sm:$0xff]
    %v74 = vadd.f32 %v50, %v58
    %v75 = vadd.f32 %v51, %v59
    %v76 = vadd.f32 %v52, %v60
    %v77 = vadd.f32 %v53, %v61
    %v78 = vadd.f32 %v54, %v62
    %v79 = vadd.f32 %v55, %v63
    %v80 = vadd.f32 %v56, %v64
    %v81 = vadd.f32 %v57, %v65
    %v82 = vadd.f32 %v74, %v66
    %v83 = vadd.f32 %v75, %v67
    %v84 = vadd.f32 %v76, %v68
    %v85 = vadd.f32 %v77, %v69
    %v86 = vadd.f32 %v78, %v70
    %v87 = vadd.f32 %v79, %v71
    %v88 = vadd.f32 %v80, %v72
    %v89 = vadd.f32 %v81, %v73
    %90 = vst [vmem:[#allocation8] sm:$0xff] %v82
    %91 = vst [vmem:[#allocation8 + $0x8] sm:$0xff] %v83
    %92 = vst [vmem:[#allocation8 + $0x10] sm:$0xff] %v84
    %93 = vst [vmem:[#allocation8 + $0x18] sm:$0xff] %v85
    %94 = vst [vmem:[#allocation8 + $0x20] sm:$0xff] %v86
    %95 = vst [vmem:[#allocation8 + $0x28] sm:$0xff] %v87
    %96 = vst [vmem:[#allocation8 + $0x30] sm:$0xff] %v88
    %97 = vst [vmem:[#allocation8 + $0x38] sm:$0xff] %v89
    // Predicated region
    $region26: #{tpu_custom_call.1} parent=1 // pred_check
      _
    $region27: #{tpu_custom_call.1} parent=1 // pred_check_branch
      %99 = sbr.rel (0) target = $region29
    $region28: #{tpu_custom_call.1} parent=1 // pred_region
      %s101 = ssub.s32 1024, 1024
      %102 = vsyncadd [#allocation4], %s101
      %s104 = sshll.u32 [#allocation8], 4
      %s105 = int_to_ptr.vmem [resolvable:$true] %s104
      %107 = dma.vmem_to_hbm [thread:$0]  %s105, 1024, %s3, [#allocation4]
    $region29: #{tpu_custom_call.1} parent=1 // pred_fallthru
      _
    // Predicated region
    $region30: #{tpu_custom_call.1} parent=1 // pred_check
      _
    $region31: #{tpu_custom_call.1} parent=1 // pred_check_branch
      %109 = sbr.rel (0) target = $region33
    $region32: #{tpu_custom_call.1} parent=1 // pred_region
      %110 = dma.done [#allocation4], 1024
    $region33: #{tpu_custom_call.1} parent=1 // pred_fallthru
      _
    %111 = vsyncpa [#allocation3], 1
    %112 = vsyncpa [#allocation6], 1
    %113 = vsyncpa [#allocation4], 1

</llo_original>
